<compile_context>
chip_gen: v5e
topology: v5e:2x2
jax: 0.10.0
libtpu: 0.0.40
codegen_flags: <defaults>
</compile_context>

<pallas_src>
import functools

import jax
import jax.numpy as jnp
from jax.experimental import pallas as pl
from jax.experimental.pallas import tpu as pltpu

GAMMA = 2.0
ALPHA = 0.25


def _cdiv(a, b):
    return -(-a // b)


def _focal_loss_kernel(p_ref, t_ref, out_ref, *, gamma, alpha, n_valid,
                       block_elems, need_mask):
    x = p_ref[...].astype(jnp.float32)
    t = t_ref[...].astype(jnp.float32)

    # Stable log(sigmoid(x)) = min(x, 0) - log(1 + exp(-|x|)).
    # log(1 - sigmoid(x)) = log(sigmoid(-x)) = log(sigmoid(x)) - x (exact identity).
    neg_abs = -jnp.abs(x)
    log_pt = jnp.minimum(x, 0.0) - jnp.log(1.0 + jnp.exp(neg_abs))
    log_one_m_pt = log_pt - x
    pt = jnp.exp(log_pt)
    one_m_pt = 1.0 - pt

    if float(gamma) == 2.0:
        # Integer-exponent fast path: VPU muls, no EUP pow.
        w_pos = one_m_pt * one_m_pt
        w_neg = pt * pt
    else:
        w_pos = one_m_pt ** gamma
        w_neg = pt ** gamma

    loss = (-alpha * w_pos * t * log_pt
            - (1.0 - alpha) * w_neg * (1.0 - t) * log_one_m_pt)

    if need_mask:
        # Zero out padded elements (only the last block can contain padding).
        i = pl.program_id(0)
        br, cc = loss.shape
        flat = (i * block_elems
                + jax.lax.broadcasted_iota(jnp.int32, (br, cc), 0) * cc
                + jax.lax.broadcasted_iota(jnp.int32, (br, cc), 1))
        loss = jnp.where(flat < n_valid, loss, 0.0)

    # One partial sum per grid step (tree reduce inside the block; no
    # serialized cross-step scalar accumulator).
    out_ref[...] = jnp.sum(loss).reshape(1, 1)


def bce_focal_loss(predict, target, *, gamma=GAMMA, alpha=ALPHA,
                   reduction="mean", lanes=512, max_block_rows=2048):
    """BCE focal loss with 'mean' (default) or 'sum' reduction."""
    assert predict.shape == target.shape
    n_total = int(predict.size)

    p = predict.reshape(-1)
    t = target.reshape(-1)

    # Lay out lane-dense: (rows, lanes) with rows a multiple of 8 sublanes.
    rows = _cdiv(n_total, lanes)
    rows = _cdiv(rows, 8) * 8
    block_rows = min(max_block_rows, rows)          # <= 4 MiB per input tile
    num_blocks = _cdiv(rows, block_rows)
    padded_rows = num_blocks * block_rows
    padded_elems = padded_rows * lanes
    need_mask = padded_elems != n_total
    if need_mask:
        p = jnp.pad(p, (0, padded_elems - n_total))
        t = jnp.pad(t, (0, padded_elems - n_total))
    p2 = p.reshape(padded_rows, lanes)
    t2 = t.reshape(padded_rows, lanes)

    kernel = functools.partial(
        _focal_loss_kernel, gamma=gamma, alpha=alpha, n_valid=n_total,
        block_elems=block_rows * lanes, need_mask=need_mask)

    partials = pl.pallas_call(
        kernel,
        out_shape=jax.ShapeDtypeStruct((num_blocks, 1), jnp.float32),
        grid_spec=pltpu.PrefetchScalarGridSpec(
            num_scalar_prefetch=0,
            grid=(num_blocks,),
            in_specs=[
                pl.BlockSpec((block_rows, lanes), lambda i: (i, 0)),
                pl.BlockSpec((block_rows, lanes), lambda i: (i, 0)),
            ],
            out_specs=pl.BlockSpec((1, 1), lambda i: (i, 0)),
        ),
        compiler_params=pltpu.CompilerParams(
            dimension_semantics=("parallel",),      # independent blocks -> megacore
            vmem_limit_bytes=32 * 1024 * 1024,      # safe on v5e/v6e/v7x
        ),
    )(p2, t2)

    total = jnp.sum(partials)
    if reduction == "mean":
        return total / jnp.float32(n_total)
    if reduction == "sum":
        return total
    # TODO(synk): reduction=None (unreduced elementwise loss) not implemented here.
    raise NotImplementedError("reduction must be 'mean' or 'sum'")


def _reference(predict, target, gamma=GAMMA, alpha=ALPHA):
    pt = jax.nn.sigmoid(predict)
    loss = (
        -alpha * (1.0 - pt) ** gamma * target * jnp.log(pt)
        - (1.0 - alpha) * pt ** gamma * (1.0 - target) * jnp.log(1.0 - pt)
    )
    return jnp.mean(loss)


if __name__ == "__main__":
    key = jax.random.PRNGKey(0)
    k1, k2, k3, k4 = jax.random.split(key, 4)

    # Case 1: small logits matrix [batch, num_candidates] (exact-fit path).
    R, C = 32, 256
    predict = jax.random.normal(k1, (R, C), dtype=jnp.float32)
    target = (jax.random.uniform(k2, (R, C)) > 0.5).astype(jnp.float32)

    out = jax.block_until_ready(bce_focal_loss(predict, target))
    ref = _reference(predict, target)
    assert jnp.allclose(out, ref, rtol=1e-5, atol=1e-6), (out, ref)

    # Case 2: odd shape exercising the padded / masked-tail path.
    p_odd = jax.random.normal(k3, (3, 700), dtype=jnp.float32)
    t_odd = (jax.random.uniform(k4, (3, 700)) > 0.5).astype(jnp.float32)
    out2 = jax.block_until_ready(bce_focal_loss(p_odd, t_odd))
    ref2 = _reference(p_odd, t_odd)
    assert jnp.allclose(out2, ref2, rtol=1e-5, atol=1e-6), (out2, ref2)

    print("KERNEL_OK")
</pallas_src>

<mosaic_0001>
module attributes {stable_mosaic.version = 11 : i64} {
  func.func @_focal_loss_kernel(%arg0: i32, %arg1: memref<16x512xf32, #tpu.memory_space<vmem>>, %arg2: memref<16x512xf32, #tpu.memory_space<vmem>>, %arg3: memref<1x1xf32, #tpu.memory_space<vmem>>) attributes {dimension_semantics = [#tpu.dimension_semantics<parallel>], iteration_bounds = array<i64: 1>, scalar_prefetch = 0 : i64, scratch_operands = 0 : i64, tpu.core_type = #tpu.core_type<tc>, window_params = [{transform_indices = @transform_0, window_bounds = array<i64: 16, 512>}, {transform_indices = @transform_1, window_bounds = array<i64: 16, 512>}, {transform_indices = @transform_2, window_bounds = array<i64: 1, 1>}]} {
    %c0 = arith.constant 0 : index
    %c0_0 = arith.constant 0 : index
    %0 = vector.load %arg1[%c0, %c0_0] : memref<16x512xf32, #tpu.memory_space<vmem>>, vector<16x512xf32>
    %c0_1 = arith.constant 0 : index
    %c0_2 = arith.constant 0 : index
    %1 = vector.load %arg2[%c0_1, %c0_2] : memref<16x512xf32, #tpu.memory_space<vmem>>, vector<16x512xf32>
    %2 = math.absf %0 : vector<16x512xf32>
    %cst = arith.constant 0.000000e+00 : f32
    %3 = vector.broadcast %cst : f32 to vector<16x512xf32>
    %4 = arith.subf %3, %2 : vector<16x512xf32>
    %cst_3 = arith.constant 0.000000e+00 : f32
    %5 = vector.broadcast %cst_3 : f32 to vector<16x512xf32>
    %6 = arith.minimumf %0, %5 : vector<16x512xf32>
    %7 = math.exp %4 : vector<16x512xf32>
    %cst_4 = arith.constant 1.000000e+00 : f32
    %8 = vector.broadcast %cst_4 : f32 to vector<16x512xf32>
    %9 = arith.addf %8, %7 : vector<16x512xf32>
    %10 = math.log %9 : vector<16x512xf32>
    %11 = arith.subf %6, %10 : vector<16x512xf32>
    %12 = arith.subf %11, %0 : vector<16x512xf32>
    %13 = math.exp %11 : vector<16x512xf32>
    %cst_5 = arith.constant 1.000000e+00 : f32
    %14 = vector.broadcast %cst_5 : f32 to vector<16x512xf32>
    %15 = arith.subf %14, %13 : vector<16x512xf32>
    %16 = arith.mulf %15, %15 : vector<16x512xf32>
    %17 = arith.mulf %13, %13 : vector<16x512xf32>
    %cst_6 = arith.constant -2.500000e-01 : f32
    %18 = vector.broadcast %cst_6 : f32 to vector<16x512xf32>
    %19 = arith.mulf %18, %16 : vector<16x512xf32>
    %20 = arith.mulf %19, %1 : vector<16x512xf32>
    %21 = arith.mulf %20, %11 : vector<16x512xf32>
    %cst_7 = arith.constant 7.500000e-01 : f32
    %22 = vector.broadcast %cst_7 : f32 to vector<16x512xf32>
    %23 = arith.mulf %22, %17 : vector<16x512xf32>
    %cst_8 = arith.constant 1.000000e+00 : f32
    %24 = vector.broadcast %cst_8 : f32 to vector<16x512xf32>
    %25 = arith.subf %24, %1 : vector<16x512xf32>
    %26 = arith.mulf %23, %25 : vector<16x512xf32>
    %27 = arith.mulf %26, %12 : vector<16x512xf32>
    %28 = arith.subf %21, %27 : vector<16x512xf32>
    %29 = vector.shape_cast %28 : vector<16x512xf32> to vector<1x16x512xf32>
    %cst_9 = arith.constant dense<0.000000e+00> : vector<1xf32>
    %30 = vector.multi_reduction <add>, %29, %cst_9 [1, 2] : vector<1x16x512xf32> to vector<1xf32>
    %31 = vector.shape_cast %30 : vector<1xf32> to vector<1x1x1xf32>
    %32 = vector.extract %31[0, 0, 0] : f32 from vector<1x1x1xf32>
    %33 = vector.broadcast %32 : f32 to vector<1x1xf32>
    %c0_10 = arith.constant 0 : index
    %c0_11 = arith.constant 0 : index
    %34 = vector.load %arg3[%c0_10, %c0_11] : memref<1x1xf32, #tpu.memory_space<vmem>>, vector<1x1xf32>
    tpu.vector_store %arg3[%c0_10, %c0_11], %33 {strides = array<i32>} : memref<1x1xf32, #tpu.memory_space<vmem>>, vector<1x1xf32>,
    return
  }
  func.func @transform_0(%arg0: i32) -> (i32, i32) {
    %c0_i32 = arith.constant 0 : i32
    %c0_i32_0 = arith.constant 0 : i32
    return %arg0, %c0_i32 : i32, i32
  }
  func.func @transform_1(%arg0: i32) -> (i32, i32) {
    %c0_i32 = arith.constant 0 : i32
    %c0_i32_0 = arith.constant 0 : i32
    return %arg0, %c0_i32 : i32, i32
  }
  func.func @transform_2(%arg0: i32) -> (i32, i32) {
    %c0_i32 = arith.constant 0 : i32
    %c0_i32_0 = arith.constant 0 : i32
    return %arg0, %c0_i32 : i32, i32
  }
}

</mosaic_0001>

<llo_original>
// kernel: tpu_custom_call.1
$region0: #{tpu_custom_call.1}
  #allocation0 [shape = 'u32[]', space=smem, size = 0x4, offset = 0x4, fixed_abs, tag = 'smem constant byte address 0x4 - core index']
  #allocation1 [shape = 'u32[72,128]{1,0:T(1,128)}', space=vmem, size = 0x9000, scoped, tag = 'internal scratch']
  %s0 = inlined_call_operand.hbm [shape: f32[16,512], index: 0, kind: input, shape index: {}]
  %s1 = inlined_call_operand.hbm [shape: f32[16,512], index: 1, kind: input, shape index: {}]
  %s2 = inlined_call_operand.hbm [shape: f32[1,1], index: 2, kind: output, shape index: {}]
  %s3 = sld [smem:[#allocation0]]
  $region26: #{tpu_custom_call.1} parent=0
    _
  %s5 = ssub.s32 1, %s3
  %s6 = scalar_select 0, %s5, %s3
  $region1: #{tpu_custom_call.1} parent=0
    #allocation2 [shape = 'u8[32768]{0}', space=vmem, size = 0x8000, scoped, tag = 'input window, operand 0, single buffered']
    #allocation3 [shape = 's32[1]{0}', space=sflag, size = 0x4, scoped, tag = 'scoped memory for tpu_custom_call.1']
    #allocation4 [shape = 's32[1]{0}', space=sflag, size = 0x4, scoped, tag = 'scoped memory for tpu_custom_call.1']
    #allocation5 [shape = 'u8[32768]{0}', space=vmem, size = 0x8000, scoped, tag = 'input window, operand 1, single buffered']
    #allocation6 [shape = 's32[1]{0}', space=sflag, size = 0x4, scoped, tag = 'scoped memory for tpu_custom_call.1']
    #allocation7 [shape = 'u8[512]{0}', space=vmem, size = 0x400, scoped, tag = 'output window, operand 0, single buffered']
    %7 = vsyncpa [#allocation3], 0
    %8 = vsyncpa [#allocation6], 0
    %9 = vsyncpa [#allocation4], 0
    // Predicated region
    $region2: #{tpu_custom_call.1} parent=1 // pred_check
      _
    $region3: #{tpu_custom_call.1} parent=1 // pred_check_branch
      %11 = sbr.rel (0) target = $region5
    $region4: #{tpu_custom_call.1} parent=1 // pred_region
      %13 = vsyncadd [#allocation3], 0
      %s14 = sshll.u32 %s0, 4
      %s15 = int_to_ptr.hbm [resolvable:$true] %s14
      %s16 = sshll.u32 [#allocation2], 4
      %s17 = int_to_ptr.vmem [resolvable:$true] %s16
      %22 = dma.hbm_to_vmem [thread:$0]  %s15, 1024, %s17, [#allocation3], 512, 512, 32
    $region5: #{tpu_custom_call.1} parent=1 // pred_fallthru
      _
    // Predicated region
    $region6: #{tpu_custom_call.1} parent=1 // pred_check
      _
    $region7: #{tpu_custom_call.1} parent=1 // pred_check_branch
      %24 = sbr.rel (0) target = $region9
    $region8: #{tpu_custom_call.1} parent=1 // pred_region
      %26 = vsyncadd [#allocation6], 0
      %s27 = sshll.u32 %s1, 4
      %s28 = int_to_ptr.hbm [resolvable:$true] %s27
      %s29 = sshll.u32 [#allocation5], 4
      %s30 = int_to_ptr.vmem [resolvable:$true] %s29
      %35 = dma.hbm_to_vmem [thread:$0]  %s28, 1024, %s30, [#allocation6], 512, 512, 32
    $region9: #{tpu_custom_call.1} parent=1 // pred_fallthru
      _
    // Predicated region
    $region10: #{tpu_custom_call.1} parent=1 // pred_check
      _
    $region11: #{tpu_custom_call.1} parent=1 // pred_check_branch
      %37 = sbr.rel (0) target = $region13
    $region12: #{tpu_custom_call.1} parent=1 // pred_region
      %39 = dma.done [#allocation3], 1024
    $region13: #{tpu_custom_call.1} parent=1 // pred_fallthru
      _
    // Predicated region
    $region14: #{tpu_custom_call.1} parent=1 // pred_check
      _
    $region15: #{tpu_custom_call.1} parent=1 // pred_check_branch
      %41 = sbr.rel (0) target = $region17
    $region16: #{tpu_custom_call.1} parent=1 // pred_region
      %43 = dma.done [#allocation6], 1024
    $region17: #{tpu_custom_call.1} parent=1 // pred_fallthru
      _
    %v44 = vld [vmem:[#allocation2] sm:$0xff]
    %v45 = vld [vmem:[#allocation2 + $0x8] sm:$0xff]
    %v46 = vld [vmem:[#allocation2 + $0x10] sm:$0xff]
    %v47 = vld [vmem:[#allocation2 + $0x18] sm:$0xff]
    %v48 = vld [vmem:[#allocation2 + $0x20] sm:$0xff]
    %v49 = vld [vmem:[#allocation2 + $0x28] sm:$0xff]
    %v50 = vld [vmem:[#allocation2 + $0x30] sm:$0xff]
    %v51 = vld [vmem:[#allocation2 + $0x38] sm:$0xff]
    %v52 = vld [vmem:[#allocation5] sm:$0xff]
    %v53 = vld [vmem:[#allocation5 + $0x8] sm:$0xff]
    %v54 = vld [vmem:[#allocation5 + $0x10] sm:$0xff]
    %v55 = vld [vmem:[#allocation5 + $0x18] sm:$0xff]
    %v56 = vld [vmem:[#allocation5 + $0x20] sm:$0xff]
    %v57 = vld [vmem:[#allocation5 + $0x28] sm:$0xff]
    %v58 = vld [vmem:[#allocation5 + $0x30] sm:$0xff]
    %v59 = vld [vmem:[#allocation5 + $0x38] sm:$0xff]
    %v60 = vand.u32 2147483647, %v44
    %v61 = vand.u32 2147483647, %v45
    %v62 = vand.u32 2147483647, %v46
    %v63 = vand.u32 2147483647, %v47
    %v64 = vand.u32 2147483647, %v48
    %v65 = vand.u32 2147483647, %v49
    %v66 = vand.u32 2147483647, %v50
    %v67 = vand.u32 2147483647, %v51
    %v68 = vsub.f32 0.0, %v60
    %v69 = vsub.f32 0.0, %v61
    %v70 = vsub.f32 0.0, %v62
    %v71 = vsub.f32 0.0, %v63
    %v72 = vsub.f32 0.0, %v64
    %v73 = vsub.f32 0.0, %v65
    %v74 = vsub.f32 0.0, %v66
    %v75 = vsub.f32 0.0, %v67
    %v76 = vmin.f32 %v44, 0.0
    %v77 = vmin.f32 %v45, 0.0
    %v78 = vmin.f32 %v46, 0.0
    %v79 = vmin.f32 %v47, 0.0
    %v80 = vmin.f32 %v48, 0.0
    %v81 = vmin.f32 %v49, 0.0
    %v82 = vmin.f32 %v50, 0.0
    %v83 = vmin.f32 %v51, 0.0
    %v84 = vmul.f32 %v68, 1.442695
    %v85 = vpow.pop %v84
    %v86 = vmul.f32 %v69, 1.442695
    %v87 = vpow.pop %v86
    %v88 = vmul.f32 %v70, 1.442695
    %v89 = vpow.pop %v88
    %v90 = vmul.f32 %v71, 1.442695
    %v91 = vpow.pop %v90
    %v92 = vmul.f32 %v72, 1.442695
    %v93 = vpow.pop %v92
    %v94 = vmul.f32 %v73, 1.442695
    %v95 = vpow.pop %v94
    %v96 = vmul.f32 %v74, 1.442695
    %v97 = vpow.pop %v96
    %v98 = vmul.f32 %v75, 1.442695
    %v99 = vpow.pop %v98
    %v100 = vadd.f32 %v85, 1.0
    %v101 = vadd.f32 %v87, 1.0
    %v102 = vadd.f32 %v89, 1.0
    %v103 = vadd.f32 %v91, 1.0
    %v104 = vadd.f32 %v93, 1.0
    %v105 = vadd.f32 %v95, 1.0
    %v106 = vadd.f32 %v97, 1.0
    %v107 = vadd.f32 %v99, 1.0
    %v108 = vlog2.pop %v100
    %v109 = vmul.f32 %v108, 0.6931472
    %v110 = vlog2.pop %v101
    %v111 = vmul.f32 %v110, 0.6931472
    %v112 = vlog2.pop %v102
    %v113 = vmul.f32 %v112, 0.6931472
    %v114 = vlog2.pop %v103
    %v115 = vmul.f32 %v114, 0.6931472
    %v116 = vlog2.pop %v104
    %v117 = vmul.f32 %v116, 0.6931472
    %v118 = vlog2.pop %v105
    %v119 = vmul.f32 %v118, 0.6931472
    %v120 = vlog2.pop %v106
    %v121 = vmul.f32 %v120, 0.6931472
    %v122 = vlog2.pop %v107
    %v123 = vmul.f32 %v122, 0.6931472
    %v124 = vsub.f32 %v76, %v109
    %v125 = vsub.f32 %v77, %v111
    %v126 = vsub.f32 %v78, %v113
    %v127 = vsub.f32 %v79, %v115
    %v128 = vsub.f32 %v80, %v117
    %v129 = vsub.f32 %v81, %v119
    %v130 = vsub.f32 %v82, %v121
    %v131 = vsub.f32 %v83, %v123
    %v132 = vsub.f32 %v124, %v44
    %v133 = vsub.f32 %v125, %v45
    %v134 = vsub.f32 %v126, %v46
    %v135 = vsub.f32 %v127, %v47
    %v136 = vsub.f32 %v128, %v48
    %v137 = vsub.f32 %v129, %v49
    %v138 = vsub.f32 %v130, %v50
    %v139 = vsub.f32 %v131, %v51
    %v140 = vmul.f32 %v124, 1.442695
    %v141 = vpow.pop %v140
    %v142 = vmul.f32 %v125, 1.442695
    %v143 = vpow.pop %v142
    %v144 = vmul.f32 %v126, 1.442695
    %v145 = vpow.pop %v144
    %v146 = vmul.f32 %v127, 1.442695
    %v147 = vpow.pop %v146
    %v148 = vmul.f32 %v128, 1.442695
    %v149 = vpow.pop %v148
    %v150 = vmul.f32 %v129, 1.442695
    %v151 = vpow.pop %v150
    %v152 = vmul.f32 %v130, 1.442695
    %v153 = vpow.pop %v152
    %v154 = vmul.f32 %v131, 1.442695
    %v155 = vpow.pop %v154
    %v156 = vsub.f32 1.0, %v141
    %v157 = vsub.f32 1.0, %v143
    %v158 = vsub.f32 1.0, %v145
    %v159 = vsub.f32 1.0, %v147
    %v160 = vsub.f32 1.0, %v149
    %v161 = vsub.f32 1.0, %v151
    %v162 = vsub.f32 1.0, %v153
    %v163 = vsub.f32 1.0, %v155
    %v164 = vmul.f32 %v156, %v156
    %v165 = vmul.f32 %v157, %v157
    %v166 = vmul.f32 %v158, %v158
    %v167 = vmul.f32 %v159, %v159
    %v168 = vmul.f32 %v160, %v160
    %v169 = vmul.f32 %v161, %v161
    %v170 = vmul.f32 %v162, %v162
    %v171 = vmul.f32 %v163, %v163
    %v172 = vmul.f32 %v141, %v141
    %v173 = vmul.f32 %v143, %v143
    %v174 = vmul.f32 %v145, %v145
    %v175 = vmul.f32 %v147, %v147
    %v176 = vmul.f32 %v149, %v149
    %v177 = vmul.f32 %v151, %v151
    %v178 = vmul.f32 %v153, %v153
    %v179 = vmul.f32 %v155, %v155
    %v180 = vmul.f32 %v164, -0.25
    %v181 = vmul.f32 %v165, -0.25
    %v182 = vmul.f32 %v166, -0.25
    %v183 = vmul.f32 %v167, -0.25
    %v184 = vmul.f32 %v168, -0.25
    %v185 = vmul.f32 %v169, -0.25
    %v186 = vmul.f32 %v170, -0.25
    %v187 = vmul.f32 %v171, -0.25
    %v188 = vmul.f32 %v180, %v52
    %v189 = vmul.f32 %v181, %v53
    %v190 = vmul.f32 %v182, %v54
    %v191 = vmul.f32 %v183, %v55
    %v192 = vmul.f32 %v184, %v56
    %v193 = vmul.f32 %v185, %v57
    %v194 = vmul.f32 %v186, %v58
    %v195 = vmul.f32 %v187, %v59
    %v196 = vmul.f32 %v188, %v124
    %v197 = vmul.f32 %v189, %v125
    %v198 = vmul.f32 %v190, %v126
    %v199 = vmul.f32 %v191, %v127
    %v200 = vmul.f32 %v192, %v128
    %v201 = vmul.f32 %v193, %v129
    %v202 = vmul.f32 %v194, %v130
    %v203 = vmul.f32 %v195, %v131
    %v204 = vmul.f32 %v172, 0.75
    %v205 = vmul.f32 %v173, 0.75
    %v206 = vmul.f32 %v174, 0.75
    %v207 = vmul.f32 %v175, 0.75
    %v208 = vmul.f32 %v176, 0.75
    %v209 = vmul.f32 %v177, 0.75
    %v210 = vmul.f32 %v178, 0.75
    %v211 = vmul.f32 %v179, 0.75
    %v212 = vsub.f32 1.0, %v52
    %v213 = vsub.f32 1.0, %v53
    %v214 = vsub.f32 1.0, %v54
    %v215 = vsub.f32 1.0, %v55
    %v216 = vsub.f32 1.0, %v56
    %v217 = vsub.f32 1.0, %v57
    %v218 = vsub.f32 1.0, %v58
    %v219 = vsub.f32 1.0, %v59
    %v220 = vmul.f32 %v204, %v212
    %v221 = vmul.f32 %v205, %v213
    %v222 = vmul.f32 %v206, %v214
    %v223 = vmul.f32 %v207, %v215
    %v224 = vmul.f32 %v208, %v216
    %v225 = vmul.f32 %v209, %v217
    %v226 = vmul.f32 %v210, %v218
    %v227 = vmul.f32 %v211, %v219
    %v228 = vmul.f32 %v220, %v132
    %v229 = vmul.f32 %v221, %v133
    %v230 = vmul.f32 %v222, %v134
    %v231 = vmul.f32 %v223, %v135
    %v232 = vmul.f32 %v224, %v136
    %v233 = vmul.f32 %v225, %v137
    %v234 = vmul.f32 %v226, %v138
    %v235 = vmul.f32 %v227, %v139
    %v236 = vsub.f32 %v196, %v228
    %v237 = vsub.f32 %v197, %v229
    %v238 = vsub.f32 %v198, %v230
    %v239 = vsub.f32 %v199, %v231
    %v240 = vsub.f32 %v200, %v232
    %v241 = vsub.f32 %v201, %v233
    %v242 = vsub.f32 %v202, %v234
    %v243 = vsub.f32 %v203, %v235
    %v244 = vadd.f32 %v236, %v237
    %v245 = vadd.f32 %v244, %v238
    %v246 = vadd.f32 %v245, %v239
    %v247 = vadd.f32 %v246, %v240
    %v248 = vadd.f32 %v247, %v241
    %v249 = vadd.f32 %v248, %v242
    %v250 = vadd.f32 %v249, %v243
    %251 = vadd.xlane.f32.xlu0 %v250
    %v252 = vpop.xlane.xlu0 %251
    %v253 = vrot.slane %v252, 4
    %v254 = vadd.f32 %v252, %v253
    %v255 = vrot.slane %v254, 2
    %v256 = vadd.f32 %v254, %v255
    %v257 = vrot.slane %v256, 1
    %v258 = vadd.f32 %v256, %v257
    %s259 = vtos %v258
    %v260 = vstv %s259
    %vm261 = vcmask 0
    %262 = vst.msk [vmem:[#allocation7] sm:$0x1] %vm261, %v260
    // Predicated region
    $region18: #{tpu_custom_call.1} parent=1 // pred_check
      _
    $region19: #{tpu_custom_call.1} parent=1 // pred_check_branch
      %264 = sbr.rel (0) target = $region21
    $region20: #{tpu_custom_call.1} parent=1 // pred_region
      %266 = vsyncadd [#allocation4], 0
      %s268 = sshll.u32 [#allocation7], 4
      %s269 = int_to_ptr.vmem [resolvable:$true] %s268
      %s270 = sshll.u32 %s2, 4
      %s271 = int_to_ptr.hbm [resolvable:$true] %s270
      %273 = dma.vmem_to_hbm [thread:$0]  %s269, 16, %s271, [#allocation4]
    $region21: #{tpu_custom_call.1} parent=1 // pred_fallthru
      _
    // Predicated region
    $region22: #{tpu_custom_call.1} parent=1 // pred_check
      _
    $region23: #{tpu_custom_call.1} parent=1 // pred_check_branch
      %275 = sbr.rel (0) target = $region25
    $region24: #{tpu_custom_call.1} parent=1 // pred_region
      %277 = dma.done [#allocation4], 16
    $region25: #{tpu_custom_call.1} parent=1 // pred_fallthru
      _
    %278 = vsyncpa [#allocation3], 1
    %279 = vsyncpa [#allocation6], 1
    %280 = vsyncpa [#allocation4], 1

</llo_original>
